<compile_context>
chip_gen: v7x
topology: tpu7x:2x2x1
jax: 0.10.0
libtpu: 0.0.40
codegen_flags: <defaults>
</compile_context>

<pallas_src>
import functools

import jax
import jax.numpy as jnp
from jax.experimental import pallas as pl
from jax.experimental.pallas import tpu as pltpu


def _round_up(x, m):
    return (x + m - 1) // m * m


def cp_l3_disc_kernel(x_ref, u_ref, c_ref, b_ref, o_ref, *, r_pad):
    # x_ref:  [TB, D]        bf16   (pipelined per grid step)
    # u_ref:  [D, 3*r_pad]   bf16   (fused U1|U2|U3, VMEM-resident)
    # c_ref:  [1, r_pad]     f32    (final projection as a row, VMEM-resident)
    # b_ref:  [1, 1]         f32    (beta, SMEM scalar)
    # o_ref:  [TB, 1]        f32
    p = jnp.dot(x_ref[...], u_ref[...], preferred_element_type=jnp.float32)

    # Lane-aligned static slices of the fused projection (offsets are multiples of 128).
    p1 = p[:, 0 * r_pad:1 * r_pad]
    p2 = p[:, 1 * r_pad:2 * r_pad]
    p3 = p[:, 2 * r_pad:3 * r_pad]

    # CCP recurrence in f32 on the VPU; "+1" folding shortens the dependent chain:
    #   p2 * h1 + h1 == (p2 + 1) * h1
    h1 = p1
    h2 = (p2 + 1.0) * h1
    h3 = (p3 + 1.0) * h2

    # Final rank-1 contraction on VPU + lane reduce (no MXU pass for an N=1 output).
    logit = jnp.sum(h3 * c_ref[...], axis=-1, keepdims=True) + b_ref[0, 0]
    o_ref[...] = jax.nn.sigmoid(logit).astype(o_ref.dtype)


def discriminator_cp_l3(x, u1, u2, u3, c, beta, *, block_b=512):
    """x: [B, D]; u*: [D, R]; c: [R, 1]; beta: scalar or [1, 1]. Returns [B, 1] f32."""
    x = jnp.asarray(x)
    B, D = x.shape
    R = u1.shape[1]
    r_pad = _round_up(R, 128)

    # Batch tile: multiple of 8 sublanes, capped so double-buffered bf16 x tiles plus the
    # resident weights stay well under scoped VMEM on every generation (incl. v7x 64 MiB).
    tb = min(_round_up(B, 8), _round_up(block_b, 8))
    b_pad = _round_up(B, tb)

    x_p = x if b_pad == B else jnp.pad(x, ((0, b_pad - B), (0, 0)))
    x_bf = x_p.astype(jnp.bfloat16)

    def pad_u(u):
        return jnp.pad(jnp.asarray(u, jnp.float32), ((0, 0), (0, r_pad - R)))

    u_cat = jnp.concatenate([pad_u(u1), pad_u(u2), pad_u(u3)], axis=1).astype(jnp.bfloat16)
    c_row = jnp.pad(jnp.asarray(c, jnp.float32).T, ((0, 0), (0, r_pad - R)))  # [1, r_pad]
    beta_s = jnp.asarray(beta, jnp.float32).reshape(1, 1)

    grid = (b_pad // tb,)
    kernel = functools.partial(cp_l3_disc_kernel, r_pad=r_pad)

    flops = 2 * b_pad * D * (3 * r_pad) + 6 * b_pad * r_pad
    bytes_accessed = (x_bf.size * 2 + u_cat.size * 2 + c_row.size * 4 + b_pad * 4 + 4)

    out = pl.pallas_call(
        kernel,
        out_shape=jax.ShapeDtypeStruct((b_pad, 1), jnp.float32),
        grid=grid,
        in_specs=[
            pl.BlockSpec((tb, D), lambda i: (i, 0)),                  # x: pipelined tiles
            pl.BlockSpec((D, 3 * r_pad), lambda i: (0, 0)),           # fused U: resident
            pl.BlockSpec((1, r_pad), lambda i: (0, 0)),               # c row: resident
            pl.BlockSpec(memory_space=pltpu.MemorySpace.SMEM),        # beta: SMEM scalar
        ],
        out_specs=pl.BlockSpec((tb, 1), lambda i: (i, 0)),
        compiler_params=pltpu.CompilerParams(
            dimension_semantics=("parallel",)),
        cost_estimate=pl.CostEstimate(
            flops=flops, transcendentals=b_pad, bytes_accessed=bytes_accessed),
    )(x_bf, u_cat, c_row, beta_s)

    return out[:B]


def reference(x, u1, u2, u3, c, beta):
    h1 = x @ u1
    h2 = (x @ u2) * h1 + h1
    h3 = (x @ u3) * h2 + h2
    return jax.nn.sigmoid(h3 @ c + beta)


if __name__ == "__main__":
    key = jax.random.PRNGKey(0)
    B, D, R = 16, 64, 32  # batch, input dim ("input"), CP rank ("rank"); output dim is 1

    k_x, k_u1, k_u2, k_u3, k_c, k_b = jax.random.split(key, 6)
    x = jax.random.normal(k_x, (B, D), dtype=jnp.float32)

    # Deterministic synthetic parameters (nn.Linear-style scaling), stored [in, out]
    # so the kernel does plain x @ W.
    s_d = 1.0 / jnp.sqrt(jnp.float32(D))
    s_r = 1.0 / jnp.sqrt(jnp.float32(R))
    u1 = jax.random.uniform(k_u1, (D, R), jnp.float32, -s_d, s_d)
    u2 = jax.random.uniform(k_u2, (D, R), jnp.float32, -s_d, s_d)
    u3 = jax.random.uniform(k_u3, (D, R), jnp.float32, -s_d, s_d)
    c = jax.random.uniform(k_c, (R, 1), jnp.float32, -s_r, s_r)
    beta = jax.random.uniform(k_b, (1, 1), jnp.float32, -s_r, s_r)

    # block_b=8 -> two grid steps at this demo size, exercising the pipelined batch grid.
    y = discriminator_cp_l3(x, u1, u2, u3, c, beta, block_b=8)
    y = jax.block_until_ready(y)

    y_ref = reference(x, u1, u2, u3, c, beta)
    assert y.shape == (B, 1)
    # bf16 MXU operands -> relaxed tolerance vs. the f32 reference.
    assert jnp.allclose(y, y_ref, atol=2e-2, rtol=2e-2), float(jnp.max(jnp.abs(y - y_ref)))
    print("KERNEL_OK")
</pallas_src>

<mosaic_0001>
module attributes {stable_mosaic.version = 11 : i64} {
  func.func @cp_l3_disc_kernel(%arg0: i32, %arg1: memref<8x64xbf16, #tpu.memory_space<vmem>>, %arg2: memref<64x384xbf16, #tpu.memory_space<vmem>>, %arg3: memref<1x128xf32, #tpu.memory_space<vmem>>, %arg4: memref<1x1xf32, #tpu.memory_space<smem>>, %arg5: memref<8x1xf32, #tpu.memory_space<vmem>>) attributes {dimension_semantics = [#tpu.dimension_semantics<parallel>], iteration_bounds = array<i64: 2>, scalar_prefetch = 0 : i64, scratch_operands = 0 : i64, tpu.core_type = #tpu.core_type<tc>, window_params = [{transform_indices = @transform_0, window_bounds = array<i64: 8, 64>}, {pipeline_mode = #tpu.pipeline_mode<synchronous>, transform_indices = @transform_1, window_bounds = array<i64: 64, 384>}, {pipeline_mode = #tpu.pipeline_mode<synchronous>, transform_indices = @transform_2, window_bounds = array<i64: 1, 128>}, {transform_indices = @transform_3, window_bounds = array<i64: 1, 1>}, {transform_indices = @transform_4, window_bounds = array<i64: 8, 1>}]} {
    %c0 = arith.constant 0 : index
    %c0_0 = arith.constant 0 : index
    %0 = vector.load %arg1[%c0, %c0_0] : memref<8x64xbf16, #tpu.memory_space<vmem>>, vector<8x64xbf16>
    %c0_1 = arith.constant 0 : index
    %c0_2 = arith.constant 0 : index
    %1 = vector.load %arg2[%c0_1, %c0_2] : memref<64x384xbf16, #tpu.memory_space<vmem>>, vector<64x384xbf16>
    %cst = arith.constant dense<0.000000e+00> : vector<8x384xf32>
    %2 = tpu.matmul %0, %1, %cst {dimension_numbers = #tpu.dot_dimension_numbers<[1], [0], [0], [1], [0, 0, 1, 1], [], []>} : vector<8x64xbf16>, vector<64x384xbf16>, vector<8x384xf32> -> vector<8x384xf32>
    %3 = vector.extract_strided_slice %2 {offsets = [0, 0], sizes = [8, 128], strides = [1, 1]} : vector<8x384xf32> to vector<8x128xf32>
    %4 = vector.extract_strided_slice %2 {offsets = [0, 128], sizes = [8, 128], strides = [1, 1]} : vector<8x384xf32> to vector<8x128xf32>
    %5 = vector.extract_strided_slice %2 {offsets = [0, 256], sizes = [8, 128], strides = [1, 1]} : vector<8x384xf32> to vector<8x128xf32>
    %cst_3 = arith.constant 1.000000e+00 : f32
    %6 = vector.broadcast %cst_3 : f32 to vector<8x128xf32>
    %7 = arith.addf %4, %6 : vector<8x128xf32>
    %8 = arith.mulf %7, %3 : vector<8x128xf32>
    %cst_4 = arith.constant 1.000000e+00 : f32
    %9 = vector.broadcast %cst_4 : f32 to vector<8x128xf32>
    %10 = arith.addf %5, %9 : vector<8x128xf32>
    %11 = arith.mulf %10, %8 : vector<8x128xf32>
    %c0_5 = arith.constant 0 : index
    %c0_6 = arith.constant 0 : index
    %12 = vector.load %arg3[%c0_5, %c0_6] : memref<1x128xf32, #tpu.memory_space<vmem>>, vector<1x128xf32>
    %13 = vector.broadcast %12 : vector<1x128xf32> to vector<8x128xf32>
    %14 = arith.mulf %11, %13 : vector<8x128xf32>
    %cst_7 = arith.constant dense<0.000000e+00> : vector<8xf32>
    %15 = vector.multi_reduction <add>, %14, %cst_7 [1] : vector<8x128xf32> to vector<8xf32>
    %16 = vector.shape_cast %15 : vector<8xf32> to vector<8x1xf32>
    %c0_8 = arith.constant 0 : index
    %c0_9 = arith.constant 0 : index
    %17 = memref.load %arg4[%c0_8, %c0_9] : memref<1x1xf32, #tpu.memory_space<smem>>
    %18 = vector.broadcast %17 : f32 to vector<8x1xf32>
    %19 = arith.addf %16, %18 : vector<8x1xf32>
    %20 = arith.negf %19 : vector<8x1xf32>
    %21 = math.exp %20 : vector<8x1xf32>
    %cst_10 = arith.constant 1.000000e+00 : f32
    %22 = vector.broadcast %cst_10 : f32 to vector<8x1xf32>
    %23 = arith.addf %22, %21 : vector<8x1xf32>
    %24 = arith.divf %22, %23 : vector<8x1xf32>
    %c0_11 = arith.constant 0 : index
    %c0_12 = arith.constant 0 : index
    %25 = vector.load %arg5[%c0_11, %c0_12] : memref<8x1xf32, #tpu.memory_space<vmem>>, vector<8x1xf32>
    tpu.vector_store %arg5[%c0_11, %c0_12], %24 {strides = array<i32>} : memref<8x1xf32, #tpu.memory_space<vmem>>, vector<8x1xf32>,
    return
  }
  func.func @transform_0(%arg0: i32) -> (i32, i32) {
    %c0_i32 = arith.constant 0 : i32
    %c0_i32_0 = arith.constant 0 : i32
    return %arg0, %c0_i32 : i32, i32
  }
  func.func @transform_1(%arg0: i32) -> (i32, i32) {
    %c0_i32 = arith.constant 0 : i32
    %c0_i32_0 = arith.constant 0 : i32
    %c0_i32_1 = arith.constant 0 : i32
    return %c0_i32, %c0_i32_0 : i32, i32
  }
  func.func @transform_2(%arg0: i32) -> (i32, i32) {
    %c0_i32 = arith.constant 0 : i32
    %c0_i32_0 = arith.constant 0 : i32
    %c0_i32_1 = arith.constant 0 : i32
    return %c0_i32, %c0_i32_0 : i32, i32
  }
  func.func @transform_3(%arg0: i32) -> (i32, i32) {
    %c0_i32 = arith.constant 0 : i32
    %c0_i32_0 = arith.constant 0 : i32
    %c0_i32_1 = arith.constant 0 : i32
    return %c0_i32, %c0_i32_0 : i32, i32
  }
  func.func @transform_4(%arg0: i32) -> (i32, i32) {
    %c0_i32 = arith.constant 0 : i32
    %c0_i32_0 = arith.constant 0 : i32
    return %arg0, %c0_i32 : i32, i32
  }
}

</mosaic_0001>

<llo_original>
// kernel: tpu_custom_call.1
$region0: #{tpu_custom_call.1}
  #allocation0 [shape = 'u32[]', space=smem, size = 0x4, offset = 0x4, fixed_abs, tag = 'smem constant byte address 0x4 - core index']
  #allocation1 [shape = 'u32[144,128]{1,0:T(1,128)}', space=vmem, size = 0x12000, scoped, tag = 'internal scratch']
  #allocation2 [shape = 'f32[1,1]{1,0:T(1,128)S(6)}', space=smem, size = 0x200, scoped, tag = 'scoped memory for tpu_custom_call.1']
  %s0 = inlined_call_operand.hbm [shape: bf16[16,64], index: 0, kind: input, shape index: {}]
  %s1 = inlined_call_operand.hbm [shape: bf16[64,384], index: 1, kind: input, shape index: {}]
  %s2 = inlined_call_operand.vmem [shape: f32[1,128], index: 2, kind: input, shape index: {}]
  %s3 = inlined_call_operand.<no memory space> [shape: f32[1,1], index: 3, kind: input, shape index: {}]
  %s4 = inlined_call_operand.vmem [shape: f32[16,1], index: 4, kind: output, shape index: {}]
  %s5 = sld [smem:[#allocation0]]
  $region57: #{tpu_custom_call.1} parent=0
    _
  %s7 = ssub.s32 1, %s5
  %s8 = scalar_select 0, %s7, %s5
  %9 = sst [smem:[#allocation2]] %s3
  $region1: #{tpu_custom_call.1} parent=0
    #allocation3 [shape = 'u8[4096]{0}', space=vmem, size = 0x1000, scoped, tag = 'input window, operand 0']
    #allocation4 [shape = 's32[2]{0}', space=sflag, size = 0x8, scoped, tag = 'scoped memory for tpu_custom_call.1']
    #allocation5 [shape = 'u8[49152]{0}', space=vmem, size = 0xc000, scoped, tag = 'input window, operand 1, single buffered']
    #allocation6 [shape = 's32[1]{0}', space=sflag, size = 0x4, scoped, tag = 'scoped memory for tpu_custom_call.1']
    %10 = vsyncpa [#allocation4], 0
    %s11 = scalar_lea.sflag [#allocation4], 1
    %12 = vsyncpa %s11, 0
    %13 = vsyncpa [#allocation6], 0
    loop: start=0, step=1, limit=4
    $region2: #{tpu_custom_call.1} parent=1 // loop_pre_header
      _
    $region3: #{tpu_custom_call.1} parent=1 // loop_header
      %s15 = sphi 0, %s19
      %p16 = scmp.ge.s32.totalorder %s15, 4
      %s25 = sphi 0, %s27
      %s28 = sphi 0, %s25
      %s29 = sphi 0, %s28
      %s45 = sphi 0, %s29
      %s49 = sphi 0, %s49
      %s51 = sphi 0, %s49
      %s52 = sphi 0, %s51
      %s66 = sphi 0, %s52
      %s70 = sphi 0, %s70
      %s72 = sphi 0, %s70
      %s73 = sphi 0, %s72
      %s87 = sphi 0, %s73
      %s91 = sphi 0, %s91
      %s93 = sphi 0, %s91
      %s94 = sphi 0, %s93
      %s108 = sphi 0, %s94
      %s114 = sphi 0, %s116
      %s117 = sphi 0, %s114
      %s118 = sphi 0, %s117
      %s134 = sphi 0, %s118
    $region4: #{tpu_custom_call.1} parent=1 // loop_header_branch
      %18 = sbr.rel (%p16) target = $region8
    $region5: #{tpu_custom_call.1} parent=1 // loop_body
      %s20 = ssub.s32 %s15, 1
      %s21 = ssub.s32 %s15, 2
      %s22 = sadd.s32 %s15, 1
      %s23 = ssub.s32 %s15, %s22
      %p24 = scmp.eq.s32.totalorder %s23, 0
      %s26 = sadd.s32 %s25, 1
      %s27 = scalar_select %p24, %s25, %s26
      %p30 = pneg %p24
      %p31 = scmp.eq.s32.totalorder %s15, 1
      %p32 = por %p30, %p31
      %p33 = scmp.ne.s32.totalorder %s25, %s28
      %p34 = scmp.eq.s32.totalorder %s15, 0
      %p35 = por %p33, %p34
      %p36 = scmp.ne.s32.totalorder %s25, %s28
      %p37 = scmp.eq.s32.totalorder %s20, 1
      %p38 = por %p36, %p37
      %p39 = scmp.ne.s32.totalorder %s28, %s29
      %p40 = scmp.eq.s32.totalorder %s20, 0
      %p41 = por %p39, %p40
      %p42 = scmp.ne.s32.totalorder %s28, %s29
      %p43 = scmp.eq.s32.totalorder %s21, 1
      %p44 = por %p42, %p43
      %p46 = scmp.ne.s32.totalorder %s29, %s45
      %p47 = scmp.eq.s32.totalorder %s21, 0
      %p48 = por %p46, %p47
      %s50 = sadd.s32 %s49, 1
      %p53 = scmp.eq.s32.totalorder %s15, 1
      %p54 = scmp.ne.s32.totalorder %s49, %s51
      %p55 = scmp.eq.s32.totalorder %s15, 0
      %p56 = por %p54, %p55
      %p57 = scmp.ne.s32.totalorder %s49, %s51
      %p58 = scmp.eq.s32.totalorder %s20, 1
      %p59 = por %p57, %p58
      %p60 = scmp.ne.s32.totalorder %s51, %s52
      %p61 = scmp.eq.s32.totalorder %s20, 0
      %p62 = por %p60, %p61
      %p63 = scmp.ne.s32.totalorder %s51, %s52
      %p64 = scmp.eq.s32.totalorder %s21, 1
      %p65 = por %p63, %p64
      %p67 = scmp.ne.s32.totalorder %s52, %s66
      %p68 = scmp.eq.s32.totalorder %s21, 0
      %p69 = por %p67, %p68
      %s71 = sadd.s32 %s70, 1
      %p74 = scmp.eq.s32.totalorder %s15, 1
      %p75 = scmp.ne.s32.totalorder %s70, %s72
      %p76 = scmp.eq.s32.totalorder %s15, 0
      %p77 = por %p75, %p76
      %p78 = scmp.ne.s32.totalorder %s70, %s72
      %p79 = scmp.eq.s32.totalorder %s20, 1
      %p80 = por %p78, %p79
      %p81 = scmp.ne.s32.totalorder %s72, %s73
      %p82 = scmp.eq.s32.totalorder %s20, 0
      %p83 = por %p81, %p82
      %p84 = scmp.ne.s32.totalorder %s72, %s73
      %p85 = scmp.eq.s32.totalorder %s21, 1
      %p86 = por %p84, %p85
      %p88 = scmp.ne.s32.totalorder %s73, %s87
      %p89 = scmp.eq.s32.totalorder %s21, 0
      %p90 = por %p88, %p89
      %s92 = sadd.s32 %s91, 1
      %p95 = scmp.eq.s32.totalorder %s15, 1
      %p96 = scmp.ne.s32.totalorder %s91, %s93
      %p97 = scmp.eq.s32.totalorder %s15, 0
      %p98 = por %p96, %p97
      %p99 = scmp.ne.s32.totalorder %s91, %s93
      %p100 = scmp.eq.s32.totalorder %s20, 1
      %p101 = por %p99, %p100
      %p102 = scmp.ne.s32.totalorder %s93, %s94
      %p103 = scmp.eq.s32.totalorder %s20, 0
      %p104 = por %p102, %p103
      %p105 = scmp.ne.s32.totalorder %s93, %s94
      %p106 = scmp.eq.s32.totalorder %s21, 1
      %p107 = por %p105, %p106
      %p109 = scmp.ne.s32.totalorder %s94, %s108
      %p110 = scmp.eq.s32.totalorder %s21, 0
      %p111 = por %p109, %p110
      %s112 = ssub.s32 %s15, %s22
      %p113 = scmp.eq.s32.totalorder %s112, 0
      %s115 = sadd.s32 %s114, 1
      %s116 = scalar_select %p113, %s114, %s115
      %p119 = pneg %p113
      %p120 = scmp.eq.s32.totalorder %s15, 1
      %p121 = por %p119, %p120
      %p122 = scmp.ne.s32.totalorder %s114, %s117
      %p123 = scmp.eq.s32.totalorder %s15, 0
      %p124 = por %p122, %p123
      %p125 = scmp.ne.s32.totalorder %s114, %s117
      %p126 = scmp.eq.s32.totalorder %s20, 1
      %p127 = por %p125, %p126
      %p128 = scmp.ne.s32.totalorder %s117, %s118
      %p129 = scmp.eq.s32.totalorder %s20, 0
      %p130 = por %p128, %p129
      %p131 = scmp.ne.s32.totalorder %s117, %s118
      %p132 = scmp.eq.s32.totalorder %s21, 1
      %p133 = por %p131, %p132
      %p135 = scmp.ne.s32.totalorder %s118, %s134
      %p136 = scmp.eq.s32.totalorder %s21, 0
      %p137 = por %p135, %p136
      %p138 = scmp.le.s32.totalorder 1, %s15
      %p139 = scmp.lt.s32.totalorder %s15, 3
      %p140 = pnand %p138, %p139
      %p141 = pneg %p140
      // Predicated region
      $region9: #{tpu_custom_call.1} parent=5 // pred_check
        _
      $region10: #{tpu_custom_call.1} parent=5 // pred_check_branch
        %143 = sbr.rel (%p140) target = $region12
      $region11: #{tpu_custom_call.1} parent=5 // pred_region
        %s144 = ssub.s32 %s15, 1
        // Predicated region
        $region13: #{tpu_custom_call.1} parent=11 // pred_check
          %p145 = pneg %p62
        $region14: #{tpu_custom_call.1} parent=11 // pred_check_branch
          %147 = sbr.rel (%p145) target = $region16
        $region15: #{tpu_custom_call.1} parent=11 // pred_region
          %s149 = ssub.s32 1536, 1536
          %150 = vsyncadd [#allocation6], %s149
          %s151 = sshll.u32 [#allocation5], 4
          %s152 = int_to_ptr.vmem [resolvable:$true] %s151
          %157 = dma.hbm_to_vmem [thread:$0]  %s1, 1536, %s152, [#allocation6], 192, 192, 12
        $region16: #{tpu_custom_call.1} parent=11 // pred_fallthru
          _
        // Predicated region
        $region17: #{tpu_custom_call.1} parent=11 // pred_check
          %p158 = pneg %p83
        $region18: #{tpu_custom_call.1} parent=11 // pred_check_branch
          %160 = sbr.rel (%p158) target = $region20
        $region19: #{tpu_custom_call.1} parent=11 // pred_region
          _
        $region20: #{tpu_custom_call.1} parent=11 // pred_fallthru
          _
        // Predicated region
        $region21: #{tpu_custom_call.1} parent=11 // pred_check
          %p161 = pneg %p104
        $region22: #{tpu_custom_call.1} parent=11 // pred_check_branch
          %163 = sbr.rel (%p161) target = $region24
        $region23: #{tpu_custom_call.1} parent=11 // pred_region
          _
        $region24: #{tpu_custom_call.1} parent=11 // pred_fallthru
          _
      $region12: #{tpu_custom_call.1} parent=5 // pred_fallthru
        _
      %p164 = scmp.lt.s32.totalorder %s15, 2
      // Predicated region
      $region25: #{tpu_custom_call.1} parent=5 // pred_check
        %p165 = pneg %p164
      $region26: #{tpu_custom_call.1} parent=5 // pred_check_branch
        %167 = sbr.rel (%p165) target = $region28
      $region27: #{tpu_custom_call.1} parent=5 // pred_region
        // Predicated region
        $region29: #{tpu_custom_call.1} parent=27 // pred_check
          %p168 = pneg %p35
        $region30: #{tpu_custom_call.1} parent=27 // pred_check_branch
          %170 = sbr.rel (%p168) target = $region32
        $region31: #{tpu_custom_call.1} parent=27 // pred_region
          %s171 = sand.u32 %s25, 1
          %s172 = scalar_lea.sflag [#allocation4], %s171
          %s173 = sand.u32 %s25, 1
          %s174 = smul.addr %s173, 4
          %s175 = scalar_lea.vmem [#allocation3], %s174
          %s177 = ssub.s32 64, 64
          %178 = vsyncadd %s172, %s177
          %s179 = smul.addr %s15, 64
          %s180 = scalar_lea.hbm %s0, %s179
          %s182 = sshll.u32 %s175, 4
          %s183 = int_to_ptr.vmem [resolvable:$true] %s182
          %185 = dma.hbm_to_vmem [thread:$0]  %s180, 64, %s183, %s172
        $region32: #{tpu_custom_call.1} parent=27 // pred_fallthru
          _
      $region28: #{tpu_custom_call.1} parent=5 // pred_fallthru
        _
      %p186 = scmp.le.s32.totalorder 1, %s15
      %p187 = scmp.lt.s32.totalorder %s15, 3
      %p188 = pnand %p186, %p187
      %p189 = pneg %p188
      // Predicated region
      $region33: #{tpu_custom_call.1} parent=5 // pred_check
        _
      $region34: #{tpu_custom_call.1} parent=5 // pred_check_branch
        %191 = sbr.rel (%p188) target = $region36
      $region35: #{tpu_custom_call.1} parent=5 // pred_region
        %s192 = ssub.s32 %s15, 1
        %s193 = sand.u32 %s28, 1
        %s194 = scalar_lea.sflag [#allocation4], %s193
        %s195 = sand.u32 %s28, 1
        %s196 = smul.addr %s195, 4
        %s197 = scalar_lea.vmem [#allocation3], %s196
        // Predicated region
        $region37: #{tpu_custom_call.1} parent=35 // pred_check
          %p198 = pneg %p41
        $region38: #{tpu_custom_call.1} parent=35 // pred_check_branch
          %200 = sbr.rel (%p198) target = $region40
        $region39: #{tpu_custom_call.1} parent=35 // pred_region
          %201 = dma.done %s194, 64
        $region40: #{tpu_custom_call.1} parent=35 // pred_fallthru
          _
        // Predicated region
        $region41: #{tpu_custom_call.1} parent=35 // pred_check
          %p202 = pneg %p62
        $region42: #{tpu_custom_call.1} parent=35 // pred_check_branch
          %204 = sbr.rel (%p202) target = $region44
        $region43: #{tpu_custom_call.1} parent=35 // pred_region
          %205 = dma.done [#allocation6], 1536
        $region44: #{tpu_custom_call.1} parent=35 // pred_fallthru
          _
        %s206 = sand.u32 %s28, 1
        %s207 = scalar_lea.sflag [#allocation4], %s206
        %s208 = sand.u32 %s28, 1
        %s209 = smul.addr %s208, 4
        %s210 = scalar_lea.vmem [#allocation3], %s209
        %p211 = pneg %p41
        %p212 = pneg %p38
        %p213 = pneg %p62
        %p214 = pneg %p59
        %p215 = pneg %p83
        %p216 = pneg %p80
        %p217 = pneg %p104
        %p218 = pneg %p101
        %p219 = pneg %p130
        %p220 = pneg %p127
        %p221 = scmp.lt.s32.totalorder %s20, 1
        %s222 = scalar_select %p221, %s20, 1
        %s223 = smul.addr %s222, 8
        %s224 = scalar_lea.vmem %s4, %s223
        %p225 = scmp.lt.s32.totalorder %s20, 1
        %s226 = scalar_select %p225, %s20, 1
        %s227 = smul.addr %s226, 8
        %s228 = scalar_lea.vmem %s4, %s227
        %v230 = vld [vmem:[%s197] sm:$0xf]
        %v231 = vld [vmem:[#allocation5] sm:$0xff]
        %v232 = vld [vmem:[#allocation5 + $0x8] sm:$0xf]
        %v233 = vld [vmem:[#allocation5 + $0xc] sm:$0xff]
        %v234 = vld [vmem:[#allocation5 + $0x14] sm:$0xf]
        %v235 = vld [vmem:[#allocation5 + $0x18] sm:$0xff]
        %v236 = vld [vmem:[#allocation5 + $0x20] sm:$0xf]
        %v237 = vld [vmem:[#allocation5 + $0x24] sm:$0xff]
        %v238 = vld [vmem:[#allocation5 + $0x2c] sm:$0xf]
        %v239 = vld [vmem:[#allocation5 + $0x30] sm:$0xff]
        %v240 = vld [vmem:[#allocation5 + $0x38] sm:$0xf]
        %v241 = vld [vmem:[#allocation5 + $0x3c] sm:$0xff]
        %v242 = vld [vmem:[#allocation5 + $0x44] sm:$0xf]
        %v243 = vld [vmem:[#allocation5 + $0x48] sm:$0xff]
        %v244 = vld [vmem:[#allocation5 + $0x50] sm:$0xf]
        %v245 = vld [vmem:[#allocation5 + $0x54] sm:$0xff]
        %v246 = vld [vmem:[#allocation5 + $0x5c] sm:$0xf]
        %v263 = vunpack.c.l.b16 %v231
        %v264 = vunpack.c.h.b16 %v231
        %v265 = vunpack.c.l.b16 %v232
        %v266 = vunpack.c.l.b16 %v233
        %v267 = vunpack.c.h.b16 %v233
        %v268 = vunpack.c.l.b16 %v234
        %v269 = vunpack.c.l.b16 %v235
        %v270 = vunpack.c.h.b16 %v235
        %v271 = vunpack.c.l.b16 %v236
        %v272 = vunpack.c.l.b16 %v237
        %v273 = vunpack.c.h.b16 %v237
        %v274 = vunpack.c.l.b16 %v238
        %v275 = vunpack.c.l.b16 %v239
        %v276 = vunpack.c.h.b16 %v239
        %v277 = vunpack.c.l.b16 %v240
        %v278 = vunpack.c.l.b16 %v241
        %v279 = vunpack.c.h.b16 %v241
        %v280 = vunpack.c.l.b16 %v242
        %v281 = vunpack.c.l.b16 %v243
        %v282 = vunpack.c.h.b16 %v243
        %v283 = vunpack.c.l.b16 %v244
        %v284 = vunpack.c.l.b16 %v245
        %v285 = vunpack.c.h.b16 %v245
        %v286 = vunpack.c.l.b16 %v246
        %v287 = vpack.c.b16 %v266, %v263
        %v288 = vpack.c.b16 %v267, %v264
        %v289 = vpack.c.b16 %v268, %v265
        %v290 = vpack.c.b16 %v272, %v269
        %v291 = vpack.c.b16 %v273, %v270
        %v292 = vpack.c.b16 %v274, %v271
        %v293 = vpack.c.b16 %v278, %v275
        %v294 = vpack.c.b16 %v279, %v276
        %v295 = vpack.c.b16 %v280, %v277
        %v296 = vpack.c.b16 %v284, %v281
        %v297 = vpack.c.b16 %v285, %v282
        %v298 = vpack.c.b16 %v286, %v283
        %vm311 = vcmask 523264
        %v313 = vsel %vm311, %v230, 0
        %315 = vmatprep.subr.bf16.mxu0 %v288
        %316 = vmatpush1.bf16.msra.mxu0 %v287
        %317 = vmatprep.subr.bf16.mxu0 %v291
        %318 = vmatpush1.bf16.msra.mxu0 %v290
        %319 = vmatprep.subr.bf16.mxu0 %v294
        %320 = vmatpush1.bf16.msra.mxu0 %v293
        %321 = vmatprep.subr.bf16.mxu0 %v297
        %322 = vmatpush1.bf16.msra.mxu0 %v296
        %323 = vmatprep.subr.bf16.mxu0 0
        %324 = vmatpush1.bf16.msra.mxu0 0
        %325 = vmatprep.subr.bf16.mxu0 0
        %326 = vmatpush1.bf16.msra.mxu0 0
        %327 = vmatprep.subr.bf16.mxu0 0
        %328 = vmatpush1.bf16.msra.mxu0 0
        %329 = vmatprep.subr.bf16.mxu0 0
        %330 = vmatpush1.bf16.msra.mxu0 0
        %331 = vmatprep.subr.bf16.mxu0 0
        %332 = vmatpush1.bf16.msra.mxu0 0
        %333 = vmatprep.subr.bf16.mxu0 0
        %334 = vmatpush1.bf16.msra.mxu0 0
        %335 = vmatprep.subr.bf16.mxu0 0
        %336 = vmatpush1.bf16.msra.mxu0 0
        %337 = vmatprep.subr.bf16.mxu0 0
        %338 = vmatpush1.bf16.msra.mxu0 0
        %339 = vmatprep.subr.bf16.mxu0 0
        %340 = vmatpush1.bf16.msra.mxu0 0
        %341 = vmatprep.subr.bf16.mxu0 0
        %342 = vmatpush1.bf16.msra.mxu0 0
        %343 = vmatprep.subr.bf16.mxu0 0
        %344 = vmatpush1.bf16.msra.mxu0 0
        %345 = vmatprep.subr.bf16.mxu0 0
        %346 = vmatpush1.bf16.msra.mxu0 0
        %347 = vmatprep.mubr.bf16.mxu0 0
        %348 = vmatmul.mubr.bf16.gmra.mrb[0].mxu0 %v313
        %v349 = vpop.f32.mrb[0].mxu0
        %v350 = vadd.f32 0.0, %v349
        %v351 = vpop.f32.mrb[0].mxu0
        %v352 = vadd.f32 0.0, %v351
        %v353 = vpop.f32.mrb[0].mxu0
        %v354 = vpop.f32.mrb[0].mxu0
        %355 = vdwg.mxu0
        %356 = vmatprep.subr.bf16.mxu0 0
        %357 = vmatpush1.bf16.msra.mxu0 %v289
        %358 = vmatprep.subr.bf16.mxu0 0
        %359 = vmatpush1.bf16.msra.mxu0 %v292
        %360 = vmatprep.subr.bf16.mxu0 0
        %361 = vmatpush1.bf16.msra.mxu0 %v295
        %362 = vmatprep.subr.bf16.mxu0 0
        %363 = vmatpush1.bf16.msra.mxu0 %v298
        %364 = vmatprep.subr.bf16.mxu0 0
        %365 = vmatpush1.bf16.msra.mxu0 0
        %366 = vmatprep.subr.bf16.mxu0 0
        %367 = vmatpush1.bf16.msra.mxu0 0
        %368 = vmatprep.subr.bf16.mxu0 0
        %369 = vmatpush1.bf16.msra.mxu0 0
        %370 = vmatprep.subr.bf16.mxu0 0
        %371 = vmatpush1.bf16.msra.mxu0 0
        %372 = vmatprep.subr.bf16.mxu0 0
        %373 = vmatpush1.bf16.msra.mxu0 0
        %374 = vmatprep.subr.bf16.mxu0 0
        %375 = vmatpush1.bf16.msra.mxu0 0
        %376 = vmatprep.subr.bf16.mxu0 0
        %377 = vmatpush1.bf16.msra.mxu0 0
        %378 = vmatprep.subr.bf16.mxu0 0
        %379 = vmatpush1.bf16.msra.mxu0 0
        %380 = vmatprep.subr.bf16.mxu0 0
        %381 = vmatpush1.bf16.msra.mxu0 0
        %382 = vmatprep.subr.bf16.mxu0 0
        %383 = vmatpush1.bf16.msra.mxu0 0
        %384 = vmatprep.subr.bf16.mxu0 0
        %385 = vmatpush1.bf16.msra.mxu0 0
        %386 = vmatprep.subr.bf16.mxu0 0
        %387 = vmatpush1.bf16.msra.mxu0 0
        %388 = vmatprep.mubr.bf16.mxu0 0
        %389 = vmatmul.mubr.bf16.gmra.mrb[0].mxu0 %v313
        %v390 = vpop.f32.mrb[0].mxu0
        %v391 = vadd.f32 0.0, %v390
        %v392 = vpop.f32.mrb[0].mxu0
        %v393 = vpop.f32.mrb[0].mxu0
        %v394 = vpop.f32.mrb[0].mxu0
        %395 = vdwg.mxu0
        %v396 = vadd.f32 %v352, 1.0
        %v397 = vmul.f32 %v396, %v350
        %v398 = vadd.f32 %v391, 1.0
        %v399 = vmul.f32 %v398, %v397
        %v400 = vld [vmem:[%s2] sm:$0x1]
        %v402 = vlaneseq
        %v403 = vshrl.u32 %v402, 7
        %v404 = vsub.s32 0, %v403
        %v405 = vrot.slane %v400, %v404
        %v407 = vmul.f32 %v399, %v405
        %408 = vadd.xlane.f32.xlu0 %v407
        %v409 = vpop.xlane.xlu0 %408
        %s410 = sld [smem:[#allocation2]]
        %v411 = vstv %s410
        %v412 = vadd.f32 %v409, %v411
        %v413 = vxor.u32 %v412, 2147483648
        %v414 = vmul.f32 %v413, 1.442695
        %v415 = vpow.pop %v414
        %v416 = vadd.f32 %v415, 1.0
        %v417 = vrcp.pop %v416
        %v418 = vmul.f32 1.0, %v417
        %vm419 = vcmask 7168
        %420 = vst.msk [vmem:[%s228] sm:$0xff] %vm419, %v418
        %p421 = scmp.lt.s32.totalorder %s20, 1
        %s422 = scalar_select %p421, %s20, 1
        %s423 = smul.addr %s422, 8
        %s424 = scalar_lea.vmem %s4, %s423
        // Predicated region
        $region45: #{tpu_custom_call.1} parent=35 // pred_check
          %p425 = pneg %p127
        $region46: #{tpu_custom_call.1} parent=35 // pred_check_branch
          %427 = sbr.rel (%p425) target = $region48
        $region47: #{tpu_custom_call.1} parent=35 // pred_region
          _
        $region48: #{tpu_custom_call.1} parent=35 // pred_fallthru
          _
      $region36: #{tpu_custom_call.1} parent=5 // pred_fallthru
        _
      %p428 = scmp.le.s32.totalorder 2, %s15
      // Predicated region
      $region49: #{tpu_custom_call.1} parent=5 // pred_check
        %p429 = pneg %p428
      $region50: #{tpu_custom_call.1} parent=5 // pred_check_branch
        %431 = sbr.rel (%p429) target = $region52
      $region51: #{tpu_custom_call.1} parent=5 // pred_region
        %s432 = ssub.s32 %s15, 2
        // Predicated region
        $region53: #{tpu_custom_call.1} parent=51 // pred_check
          %p433 = pneg %p133
        $region54: #{tpu_custom_call.1} parent=51 // pred_check_branch
          %435 = sbr.rel (%p433) target = $region56
        $region55: #{tpu_custom_call.1} parent=51 // pred_region
          %p436 = scmp.lt.s32.totalorder %s21, 1
          %s437 = scalar_select %p436, %s21, 1
          %s438 = smul.addr %s437, 8
          %s439 = scalar_lea.vmem %s4, %s438
        $region56: #{tpu_custom_call.1} parent=51 // pred_fallthru
          _
      $region52: #{tpu_custom_call.1} parent=5 // pred_fallthru
        _
    $region6: #{tpu_custom_call.1} parent=1 // loop_footer
      %s19 = sadd.s32 1, %s15
    $region7: #{tpu_custom_call.1} parent=1 // loop_footer_branch
      %14 = sbr.rel target = $region3
    $region8: #{tpu_custom_call.1} parent=1 // loop_exit
      _
    %440 = vsyncpa [#allocation4], 1
    %s441 = scalar_lea.sflag [#allocation4], 1
    %442 = vsyncpa %s441, 1
    %443 = vsyncpa [#allocation6], 1

</llo_original>
